<compile_context>
chip_gen: v7x
topology: tpu7x:2x2x1
jax: 0.10.0
libtpu: 0.0.40
codegen_flags: <defaults>
</compile_context>

<pallas_src>
import functools

import jax
import jax.numpy as jnp
from jax import lax
from jax.experimental import pallas as pl
from jax.experimental.pallas import tpu as pltpu

NEG = -2e20


# --------------------------------------------------------------------------
# kernels
# --------------------------------------------------------------------------
def _single_pass_kernel(x1_ref, x2_ref, keep_ref, mrow_ref, w_ref,
                        attn_a_ref, attn_b_ref, *, mm_dtype):
    """grid = (b,).  Whole (n, m) similarity resident; exp computed once."""
    x1 = x1_ref[...]                                   # (n, d)
    x1f = x1.astype(jnp.float32)
    x2 = x2_ref[...]                                   # (m, d), already mm_dtype
    w1 = w_ref[0:1, :]                                 # (1, d) f32
    w2 = w_ref[1:2, :]
    w3 = w_ref[2:3, :]

    # addcol[j] = w2.x2_j + bias + NEG*x2_mask[j]  (bias/mask folded in mrow).
    s2 = lax.dot_general(w2.astype(mm_dtype), x2, (((1,), (1,)), ((), ())),
                         preferred_element_type=jnp.float32)          # (1, m)
    addcol = mrow_ref[...] + s2

    # Rank-1 w1.x1 term on the VPU (lane reduction), not the MXU.
    s1 = jnp.sum(x1f * w1, axis=1, keepdims=True)                     # (n, 1)
    # s3[i,j] = (x1_i*w3).x2_j  -- d contraction, no transpose.
    s3 = lax.dot_general((x1f * w3).astype(mm_dtype), x2,
                         (((1,), (1,)), ((), ())),
                         preferred_element_type=jnp.float32)          # (n, m)
    sim = s3 + s1 + addcol                          # x2-masked similarity

    # ---- row softmax (over m): the single big n*m exp ----
    rmax = jnp.max(sim, axis=1, keepdims=True)                        # (n, 1)
    p = jnp.exp(sim - rmax)                                           # (n, m)
    rinv = pl.reciprocal(jnp.sum(p, axis=1, keepdims=True), approx=True)
    sim_row = (p * rinv).astype(mm_dtype)                             # (n, m)

    attn_a_ref[...] = jnp.dot(
        sim_row, x2, preferred_element_type=jnp.float32).astype(attn_a_ref.dtype)

    # ---- column softmax (over n), reusing p (exp-once) ----
    # Q[i,j] = keep1[i] * exp(sim_b[i,j] - gmax) = keep1[i] * p[i,j] * e^{rmax_i-gmax};
    # the per-column offset cancels between numerator and csum, so only n extra
    # exps are needed.  A column whose kept entries all underflow gets q2c = 0
    # (guarded reciprocal); in practice this only happens for fully-x2-masked
    # columns, whose sim_row weights are exactly 0 anyway.
    gmax = jnp.max(rmax, axis=0, keepdims=True)                       # (1, 1)
    arow = jnp.exp(rmax - gmax) * keep_ref[...]                       # (n, 1)
    q = p * arow                                                      # (n, m)
    csum = jnp.sum(q, axis=0, keepdims=True)                          # (1, m)
    q2ct = lax.dot_general(x1.astype(mm_dtype), q.astype(mm_dtype),
                           (((0,), (0,)), ((), ())),
                           preferred_element_type=jnp.float32)        # (d, m)
    cinv = jnp.where(csum > 0.0, pl.reciprocal(csum, approx=True), 0.0)
    q2ct = (q2ct * cinv).astype(mm_dtype)

    # attn_b = sim_row @ q2c  == contract m against q2c^T (d, m).
    attn_b_ref[...] = lax.dot_general(
        sim_row, q2ct, (((1,), (1,)), ((), ())),
        preferred_element_type=jnp.float32).astype(attn_b_ref.dtype)


def _col_kernel(x1_ref, x2_ref, addrow_ref, mrow_ref, w_ref,
                q2c_ref, addcol_ref,
                cmax_ref, csum_ref, acc_ref, *, mm_dtype):
    """Tiled column pass.  grid = (b, nt); n-tile axis is a reduction.

    Flash-style online column softmax accumulated into (cmax, csum, q2c^T)
    scratch; the normalized q2c^T (mm_dtype) and addcol are emitted once per
    batch element for the row pass.
    """
    t = pl.program_id(1)
    nt = pl.num_programs(1)

    x1 = x1_ref[...]                                   # (tn, d)
    x1f = x1.astype(jnp.float32)
    x2 = x2_ref[...]                                   # (m, d) mm_dtype
    w1 = w_ref[0:1, :]
    w2 = w_ref[1:2, :]
    w3 = w_ref[2:3, :]

    @pl.when(t == 0)
    def _init():
        cmax_ref[...] = jnp.full(cmax_ref.shape, -jnp.inf, cmax_ref.dtype)
        csum_ref[...] = jnp.zeros(csum_ref.shape, csum_ref.dtype)
        acc_ref[...] = jnp.zeros(acc_ref.shape, acc_ref.dtype)
        # addcol computed once per batch from the resident x2 (no extra HBM pass).
        s2 = lax.dot_general(w2.astype(mm_dtype), x2, (((1,), (1,)), ((), ())),
                             preferred_element_type=jnp.float32)      # (1, m)
        addcol_ref[...] = mrow_ref[...] + s2

    s1 = jnp.sum(x1f * w1, axis=1, keepdims=True)                     # (tn, 1)
    s3 = lax.dot_general((x1f * w3).astype(mm_dtype), x2,
                         (((1,), (1,)), ((), ())),
                         preferred_element_type=jnp.float32)          # (tn, m)
    # addcol: x2 mask + bias + w2.x2 ; addrow: x1 mask (additive NEG == masked_fill).
    sim_b = s3 + s1 + addcol_ref[...] + addrow_ref[...]

    tmax = jnp.max(sim_b, axis=0, keepdims=True)                      # (1, m)
    new_max = jnp.maximum(cmax_ref[...], tmax)
    scale = jnp.exp(cmax_ref[...] - new_max)
    ecol = jnp.exp(sim_b - new_max)                                   # (tn, m)
    csum_ref[...] = csum_ref[...] * scale + jnp.sum(ecol, axis=0, keepdims=True)
    # q2c kept transposed (d, m): contraction over the n-tile axis, no transpose.
    acc_ref[...] = acc_ref[...] * scale + lax.dot_general(
        x1.astype(mm_dtype), ecol.astype(mm_dtype),
        (((0,), (0,)), ((), ())),
        preferred_element_type=jnp.float32)
    cmax_ref[...] = new_max

    @pl.when(t == nt - 1)
    def _finalize():
        q2c_ref[...] = (acc_ref[...] * pl.reciprocal(csum_ref[...], approx=True)
                        ).astype(q2c_ref.dtype)


def _row_kernel(x1_ref, x2_ref, addcol_ref, q2c_ref, w_ref,
                attn_a_ref, attn_b_ref, *, mm_dtype):
    """Tiled row pass.  grid = (b, nt), both axes parallel (megacore-friendly)."""
    x1f = x1_ref[...].astype(jnp.float32)              # (tn, d)
    x2 = x2_ref[...]                                   # (m, d) mm_dtype
    w1 = w_ref[0:1, :]
    w3 = w_ref[2:3, :]

    s1 = jnp.sum(x1f * w1, axis=1, keepdims=True)                     # (tn, 1)
    s3 = lax.dot_general((x1f * w3).astype(mm_dtype), x2,
                         (((1,), (1,)), ((), ())),
                         preferred_element_type=jnp.float32)          # (tn, m)
    sim = s3 + s1 + addcol_ref[...]                                   # x2-masked

    rmax = jnp.max(sim, axis=1, keepdims=True)                        # (tn, 1)
    p = jnp.exp(sim - rmax)
    rinv = pl.reciprocal(jnp.sum(p, axis=1, keepdims=True), approx=True)
    sim_row = (p * rinv).astype(mm_dtype)

    attn_a_ref[...] = jnp.dot(
        sim_row, x2, preferred_element_type=jnp.float32).astype(attn_a_ref.dtype)
    # q2c_ref is already mm_dtype (written that way by the column pass).
    attn_b_ref[...] = lax.dot_general(
        sim_row, q2c_ref[...], (((1,), (1,)), ((), ())),
        preferred_element_type=jnp.float32).astype(attn_b_ref.dtype)


# --------------------------------------------------------------------------
# wrapper
# --------------------------------------------------------------------------
def _round_up(x, k):
    return ((x + k - 1) // k) * k


def _vmem_capacity_bytes():
    try:
        cap = int(pltpu.get_tpu_info().vmem_capacity_bytes)
    except Exception:
        cap = 64 << 20          # conservative (v7x-class) fallback
    return max(cap, 32 << 20)


def biattention(x1, x1_mask, x2, x2_mask, weight, bias, *,
                matmul_dtype=jnp.bfloat16, tn=None, force_tiled=False,
                vmem_limit_bytes=None):
    """Pallas BiAttention.  weight: (1, 3d), bias: (1,).  Returns (attn_a, attn_b).

    matmul_dtype (default bf16) affects MXU operands only; softmax / accumulation
    math stays f32.  Pass matmul_dtype=jnp.float32 for bit-closest results.
    Passing tn (multiple of 8) and/or force_tiled=True forces the tiled path.
    """
    b, n, d = x1.shape
    m = x2.shape[1]
    out_dtype = x1.dtype
    mm_dtype = jnp.dtype(matmul_dtype)

    cap = _vmem_capacity_bytes()
    small_vmem = cap <= (96 << 20)                  # v7x-class (64 MiB / TC)
    if vmem_limit_bytes is None:
        vmem_limit_bytes = min(int(cap * 0.8), 100 << 20)

    wf = weight.reshape(3, d).astype(jnp.float32)   # rows: w1, w2, w3
    biasf = bias.astype(jnp.float32)[0]
    # Additive x2-mask + bias row (does NOT touch x2; w2.x2 is computed in-kernel).
    # NEG dominates any O(1) addition in f32, so "+NEG" == masked_fill(-2e20).
    mrow = (x2_mask.astype(jnp.float32) * NEG + biasf).reshape(b, 1, m)
    # x2 is only ever an MXU operand inside the kernels: cast once here.
    x2_mm = x2.astype(mm_dtype)

    isz = x1.dtype.itemsize
    osz = jnp.dtype(out_dtype).itemsize
    msz = mm_dtype.itemsize

    # ---------------- single-pass fast path ----------------
    sp_bytes = (2 * n * d * isz            # x1 (double-buffered)
                + 2 * m * d * msz          # x2
                + 4 * n * d * osz          # attn_a / attn_b (double-buffered)
                + 5 * n * m * 4            # sim / p / q f32 temporaries
                + 3 * n * d * 4            # x1 f32 / mm temporaries
                + 4 * (n + m + d) * 4)
    sp_budget = (22 << 20) if small_vmem else (48 << 20)
    use_single = (not force_tiled) and (tn is None) and (sp_bytes <= sp_budget)

    if use_single:
        keep1 = (1.0 - x1_mask.astype(jnp.float32)).reshape(b, n, 1)
        return pl.pallas_call(
            functools.partial(_single_pass_kernel, mm_dtype=mm_dtype),
            out_shape=(jax.ShapeDtypeStruct((b, n, d), out_dtype),
                       jax.ShapeDtypeStruct((b, n, d), out_dtype)),
            grid_spec=pltpu.PrefetchScalarGridSpec(
                num_scalar_prefetch=0,
                grid=(b,),
                in_specs=[
                    pl.BlockSpec((None, n, d), lambda i: (i, 0, 0)),   # x1
                    pl.BlockSpec((None, m, d), lambda i: (i, 0, 0)),   # x2 (mm)
                    pl.BlockSpec((None, n, 1), lambda i: (i, 0, 0)),   # keep1
                    pl.BlockSpec((None, 1, m), lambda i: (i, 0, 0)),   # mrow
                    pl.BlockSpec((3, d), lambda i: (0, 0)),            # weights
                ],
                out_specs=[
                    pl.BlockSpec((None, n, d), lambda i: (i, 0, 0)),
                    pl.BlockSpec((None, n, d), lambda i: (i, 0, 0)),
                ],
            ),
            compiler_params=pltpu.CompilerParams(
                dimension_semantics=("parallel",),
                vmem_limit_bytes=vmem_limit_bytes),
        )(x1, x2_mm, keep1, mrow, wf)

    # ---------------- tiled (large-n) path ----------------
    if tn is None:
        candidates = (256, 128) if small_vmem else (512, 256, 128)
        budget = (26 << 20) if small_vmem else (56 << 20)
        tn = candidates[-1]
        for cand in candidates:
            col_b = (2 * cand * d * isz + 2 * m * d * msz + 2 * cand * 4
                     + 4 * m * 4 + 2 * d * m * msz
                     + (2 * m + d * m) * 4 + 3 * cand * m * 4 + 2 * cand * d * 4)
            row_b = (2 * cand * d * isz + 2 * m * d * msz + 2 * m * 4
                     + 2 * d * m * msz + 4 * cand * d * osz
                     + 3 * cand * m * 4 + 2 * cand * d * 4)
            if max(col_b, row_b) <= budget:
                tn = cand
                break
        tn = min(tn, _round_up(n, 8))       # don't over-pad a tiny n
    if tn % 8 != 0:
        raise ValueError(f"tn={tn} must be a multiple of 8")

    n_pad = _round_up(n, tn)
    nt = n_pad // tn
    if n_pad != n:
        # Padded rows carry x1_mask=True so they are excluded from the column
        # softmax; their (garbage but finite) attn rows are sliced off below.
        x1_p = jnp.pad(x1, ((0, 0), (0, n_pad - n), (0, 0)))
        x1_mask_p = jnp.pad(x1_mask, ((0, 0), (0, n_pad - n)),
                            constant_values=True)
    else:
        x1_p, x1_mask_p = x1, x1_mask
    addrow = (x1_mask_p.astype(jnp.float32) * NEG).reshape(b, n_pad, 1)

    # NOTE: x2 / mrow / weights are batch-resident; pipeline_mode=pl.Buffered(1)
    # would halve their VMEM, left out here to keep the build maximally portable.
    q2ct, addcol = pl.pallas_call(
        functools.partial(_col_kernel, mm_dtype=mm_dtype),
        out_shape=(jax.ShapeDtypeStruct((b, d, m), mm_dtype),
                   jax.ShapeDtypeStruct((b, 1, m), jnp.float32)),
        grid_spec=pltpu.PrefetchScalarGridSpec(
            num_scalar_prefetch=0,
            grid=(b, nt),
            in_specs=[
                pl.BlockSpec((None, tn, d), lambda i, t: (i, t, 0)),   # x1 tile
                pl.BlockSpec((None, m, d), lambda i, t: (i, 0, 0)),    # x2 (mm)
                pl.BlockSpec((None, tn, 1), lambda i, t: (i, t, 0)),   # addrow
                pl.BlockSpec((None, 1, m), lambda i, t: (i, 0, 0)),    # mrow
                pl.BlockSpec((3, d), lambda i, t: (0, 0)),             # weights
            ],
            out_specs=[
                pl.BlockSpec((None, d, m), lambda i, t: (i, 0, 0)),    # q2c^T
                pl.BlockSpec((None, 1, m), lambda i, t: (i, 0, 0)),    # addcol
            ],
            scratch_shapes=[pltpu.VMEM((1, m), jnp.float32),   # running col max
                            pltpu.VMEM((1, m), jnp.float32),   # running col exp-sum
                            pltpu.VMEM((d, m), jnp.float32)],  # q2c^T accumulator
        ),
        compiler_params=pltpu.CompilerParams(
            dimension_semantics=("parallel", "arbitrary"),
            vmem_limit_bytes=vmem_limit_bytes),
    )(x1_p, x2_mm, addrow, mrow, wf)

    attn_a, attn_b = pl.pallas_call(
        functools.partial(_row_kernel, mm_dtype=mm_dtype),
        out_shape=(jax.ShapeDtypeStruct((b, n_pad, d), out_dtype),
                   jax.ShapeDtypeStruct((b, n_pad, d), out_dtype)),
        grid_spec=pltpu.PrefetchScalarGridSpec(
            num_scalar_prefetch=0,
            grid=(b, nt),
            in_specs=[
                pl.BlockSpec((None, tn, d), lambda i, t: (i, t, 0)),   # x1 tile
                pl.BlockSpec((None, m, d), lambda i, t: (i, 0, 0)),    # x2 (mm)
                pl.BlockSpec((None, 1, m), lambda i, t: (i, 0, 0)),    # addcol
                pl.BlockSpec((None, d, m), lambda i, t: (i, 0, 0)),    # q2c^T
                pl.BlockSpec((3, d), lambda i, t: (0, 0)),             # weights
            ],
            out_specs=[
                pl.BlockSpec((None, tn, d), lambda i, t: (i, t, 0)),
                pl.BlockSpec((None, tn, d), lambda i, t: (i, t, 0)),
            ],
        ),
        compiler_params=pltpu.CompilerParams(
            dimension_semantics=("parallel", "parallel"),
            vmem_limit_bytes=vmem_limit_bytes),
    )(x1_p, x2_mm, addcol, q2ct, wf)

    if n_pad != n:
        attn_a = attn_a[:, :n]
        attn_b = attn_b[:, :n]
    return attn_a, attn_b


# --------------------------------------------------------------------------
# pure-JAX reference (matches the PyTorch forward exactly)
# --------------------------------------------------------------------------
def biattention_reference(x1, x1_mask, x2, x2_mask, weight, bias):
    d = x1.shape[-1]
    w1, w2, w3 = weight[0, :d], weight[0, d:2 * d], weight[0, 2 * d:]
    sim = (jnp.einsum('bnd,bmd->bnm', x1 * w3[None, None, :], x2)
           + jnp.einsum('bnd,d->bn', x1, w1)[:, :, None]
           + jnp.einsum('bmd,d->bm', x2, w2)[:, None, :]
           + bias[0])
    sim_a = jnp.where(x2_mask[:, None, :], NEG, sim)
    sim_row = jax.nn.softmax(sim_a, axis=2)
    attn_a = jnp.einsum('bnm,bmd->bnd', sim_row, x2)
    sim_b = jnp.where(x1_mask[:, :, None], NEG, sim_a)
    sim_col = jax.nn.softmax(sim_b, axis=1)
    q2c = jnp.einsum('bnm,bnd->bmd', sim_col, x1)
    attn_b = jnp.einsum('bnm,bmd->bnd', sim_row, q2c)
    return attn_a, attn_b


if __name__ == "__main__":
    key = jax.random.PRNGKey(0)
    k1, k2, k3, k4 = jax.random.split(key, 4)

    b, n, m, d = 2, 16, 16, 32
    x1 = jax.random.normal(k1, (b, n, d), dtype=jnp.float32)
    x2 = jax.random.normal(k2, (b, m, d), dtype=jnp.float32)

    # masks: True == padded position (same convention as masked_fill_ in torch)
    x1_lens = jnp.array([n, 6])
    x2_lens = jnp.array([m, 12])
    x1_mask = jnp.arange(n)[None, :] >= x1_lens[:, None]   # (b, n) bool
    x2_mask = jnp.arange(m)[None, :] >= x2_lens[:, None]   # (b, m) bool

    # nn.Linear(3*dim, 1): weight (1, 3d), bias (1,)
    weight = (jax.random.uniform(k3, (1, 3 * d), dtype=jnp.float32) - 0.5) * 0.2
    bias = (jax.random.uniform(k4, (1,), dtype=jnp.float32) - 0.5) * 0.2

    ref_a, ref_b = biattention_reference(x1, x1_mask, x2, x2_mask, weight, bias)

    # 1) single-pass fast path, f32 MXU operands (tolerance covers approx recip)
    a32, b32 = biattention(x1, x1_mask, x2, x2_mask, weight, bias,
                           matmul_dtype=jnp.float32)
    jax.block_until_ready((a32, b32))
    assert a32.shape == (b, n, d) and b32.shape == (b, n, d)
    assert jnp.allclose(a32, ref_a, rtol=1e-2, atol=1e-2)
    assert jnp.allclose(b32, ref_b, rtol=1e-2, atol=1e-2)

    # 2) single-pass fast path, default bf16 MXU operands
    abf, bbf = biattention(x1, x1_mask, x2, x2_mask, weight, bias)
    jax.block_until_ready((abf, bbf))
    assert jnp.allclose(abf, ref_a, rtol=3e-2, atol=3e-2)
    assert jnp.allclose(bbf, ref_b, rtol=3e-2, atol=3e-2)

    # 3) tiled flash-style path, forced, with tn=8 -> 2 n-tiles so the online
    #    column-softmax accumulation and the two-call hand-off are exercised.
    at, bt = biattention(x1, x1_mask, x2, x2_mask, weight, bias,
                         matmul_dtype=jnp.float32, force_tiled=True, tn=8)
    jax.block_until_ready((at, bt))
    assert at.shape == (b, n, d) and bt.shape == (b, n, d)
    assert jnp.allclose(at, ref_a, rtol=1e-2, atol=1e-2)
    assert jnp.allclose(bt, ref_b, rtol=1e-2, atol=1e-2)

    print("KERNEL_OK")
</pallas_src>

<mosaic_0001>
module attributes {stable_mosaic.version = 11 : i64} {
  func.func @_single_pass_kernel(%arg0: i32, %arg1: memref<1x16x32xf32, #tpu.memory_space<vmem>>, %arg2: memref<1x16x32xf32, #tpu.memory_space<vmem>>, %arg3: memref<1x16x1xf32, #tpu.memory_space<vmem>>, %arg4: memref<1x1x16xf32, #tpu.memory_space<vmem>>, %arg5: memref<3x32xf32, #tpu.memory_space<vmem>>, %arg6: memref<1x16x32xf32, #tpu.memory_space<vmem>>, %arg7: memref<1x16x32xf32, #tpu.memory_space<vmem>>) attributes {dimension_semantics = [#tpu.dimension_semantics<parallel>], iteration_bounds = array<i64: 2>, scalar_prefetch = 0 : i64, scratch_operands = 0 : i64, tpu.core_type = #tpu.core_type<tc>, window_params = [{transform_indices = @transform_0, window_bounds = array<i64: 1, 16, 32>}, {transform_indices = @transform_1, window_bounds = array<i64: 1, 16, 32>}, {transform_indices = @transform_2, window_bounds = array<i64: 1, 16, 1>}, {transform_indices = @transform_3, window_bounds = array<i64: 1, 1, 16>}, {pipeline_mode = #tpu.pipeline_mode<synchronous>, transform_indices = @transform_4, window_bounds = array<i64: 3, 32>}, {transform_indices = @transform_5, window_bounds = array<i64: 1, 16, 32>}, {transform_indices = @transform_6, window_bounds = array<i64: 1, 16, 32>}]} {
    %c0 = arith.constant 0 : index
    %c0_0 = arith.constant 0 : index
    %c0_1 = arith.constant 0 : index
    %0 = vector.load %arg1[%c0, %c0_0, %c0_1] : memref<1x16x32xf32, #tpu.memory_space<vmem>>, vector<1x16x32xf32>
    %1 = vector.shape_cast %0 : vector<1x16x32xf32> to vector<16x32xf32>
    %c0_2 = arith.constant 0 : index
    %c0_3 = arith.constant 0 : index
    %c0_4 = arith.constant 0 : index
    %2 = vector.load %arg2[%c0_2, %c0_3, %c0_4] : memref<1x16x32xf32, #tpu.memory_space<vmem>>, vector<1x16x32xf32>
    %3 = vector.shape_cast %2 : vector<1x16x32xf32> to vector<16x32xf32>
    %c0_5 = arith.constant 0 : index
    %c0_6 = arith.constant 0 : index
    %4 = vector.load %arg5[%c0_5, %c0_6] : memref<3x32xf32, #tpu.memory_space<vmem>>, vector<1x32xf32>
    %c1 = arith.constant 1 : index
    %c0_7 = arith.constant 0 : index
    %5 = vector.load %arg5[%c1, %c0_7] : memref<3x32xf32, #tpu.memory_space<vmem>>, vector<1x32xf32>
    %c2 = arith.constant 2 : index
    %c0_8 = arith.constant 0 : index
    %6 = vector.load %arg5[%c2, %c0_8] : memref<3x32xf32, #tpu.memory_space<vmem>>, vector<1x32xf32>
    %cst = arith.constant dense<0.000000e+00> : vector<1x16xf32>
    %7 = tpu.matmul %5, %3, %cst {dimension_numbers = #tpu.dot_dimension_numbers<[1], [1], [0], [0], [0, 0, 1, 0], [], []>} : vector<1x32xf32>, vector<16x32xf32>, vector<1x16xf32> -> vector<1x16xf32>
    %c0_9 = arith.constant 0 : index
    %c0_10 = arith.constant 0 : index
    %c0_11 = arith.constant 0 : index
    %8 = vector.load %arg4[%c0_9, %c0_10, %c0_11] : memref<1x1x16xf32, #tpu.memory_space<vmem>>, vector<1x1x16xf32>
    %9 = vector.shape_cast %8 : vector<1x1x16xf32> to vector<1x16xf32>
    %10 = arith.addf %9, %7 : vector<1x16xf32>
    %11 = vector.broadcast %4 : vector<1x32xf32> to vector<16x32xf32>
    %12 = arith.mulf %1, %11 : vector<16x32xf32>
    %cst_12 = arith.constant dense<0.000000e+00> : vector<16xf32>
    %13 = vector.multi_reduction <add>, %12, %cst_12 [1] : vector<16x32xf32> to vector<16xf32>
    %14 = vector.shape_cast %13 : vector<16xf32> to vector<16x1xf32>
    %15 = vector.broadcast %6 : vector<1x32xf32> to vector<16x32xf32>
    %16 = arith.mulf %1, %15 : vector<16x32xf32>
    %cst_13 = arith.constant dense<0.000000e+00> : vector<16x16xf32>
    %17 = tpu.matmul %16, %3, %cst_13 {dimension_numbers = #tpu.dot_dimension_numbers<[1], [1], [0], [0], [0, 0, 1, 0], [], []>} : vector<16x32xf32>, vector<16x32xf32>, vector<16x16xf32> -> vector<16x16xf32>
    %18 = vector.broadcast %14 : vector<16x1xf32> to vector<16x16xf32>
    %19 = arith.addf %17, %18 : vector<16x16xf32>
    %20 = vector.broadcast %10 : vector<1x16xf32> to vector<16x16xf32>
    %21 = arith.addf %19, %20 : vector<16x16xf32>
    %cst_14 = arith.constant dense<0xFF800000> : vector<16xf32>
    %22 = vector.multi_reduction <maximumf>, %21, %cst_14 [1] : vector<16x16xf32> to vector<16xf32>
    %23 = vector.shape_cast %22 : vector<16xf32> to vector<16x1xf32>
    %24 = vector.broadcast %23 : vector<16x1xf32> to vector<16x16xf32>
    %25 = arith.subf %21, %24 : vector<16x16xf32>
    %26 = math.exp %25 : vector<16x16xf32>
    %cst_15 = arith.constant dense<0.000000e+00> : vector<16xf32>
    %27 = vector.multi_reduction <add>, %26, %cst_15 [1] : vector<16x16xf32> to vector<16xf32>
    %28 = vector.shape_cast %27 : vector<16xf32> to vector<16x1xf32>
    %29 = tpu.reciprocal %28 {approx = true} : vector<16x1xf32> -> vector<16x1xf32>
    %30 = vector.broadcast %29 : vector<16x1xf32> to vector<16x16xf32>
    %31 = arith.mulf %26, %30 : vector<16x16xf32>
    %cst_16 = arith.constant dense<0.000000e+00> : vector<16x32xf32>
    %32 = tpu.matmul %31, %3, %cst_16 {dimension_numbers = #tpu.dot_dimension_numbers<[1], [0], [0], [1], [0, 0, 1, 1], [], []>} : vector<16x16xf32>, vector<16x32xf32>, vector<16x32xf32> -> vector<16x32xf32>
    %c0_17 = arith.constant 0 : index
    %c0_18 = arith.constant 0 : index
    %c0_19 = arith.constant 0 : index
    %33 = vector.load %arg6[%c0_17, %c0_18, %c0_19] : memref<1x16x32xf32, #tpu.memory_space<vmem>>, vector<1x16x32xf32>
    %34 = vector.shape_cast %33 : vector<1x16x32xf32> to vector<16x32xf32>
    %35 = vector.shape_cast %32 : vector<16x32xf32> to vector<1x16x32xf32>
    tpu.vector_store %arg6[%c0_17, %c0_18, %c0_19], %35 {strides = array<i32>} : memref<1x16x32xf32, #tpu.memory_space<vmem>>, vector<1x16x32xf32>,
    %cst_20 = arith.constant dense<0xFF800000> : vector<1xf32>
    %36 = vector.multi_reduction <maximumf>, %23, %cst_20 [0] : vector<16x1xf32> to vector<1xf32>
    %37 = vector.shape_cast %36 : vector<1xf32> to vector<1x1xf32>
    %38 = vector.broadcast %37 : vector<1x1xf32> to vector<16x1xf32>
    %39 = arith.subf %23, %38 : vector<16x1xf32>
    %40 = math.exp %39 : vector<16x1xf32>
    %c0_21 = arith.constant 0 : index
    %c0_22 = arith.constant 0 : index
    %c0_23 = arith.constant 0 : index
    %41 = vector.load %arg3[%c0_21, %c0_22, %c0_23] : memref<1x16x1xf32, #tpu.memory_space<vmem>>, vector<1x16x1xf32>
    %42 = vector.shape_cast %41 : vector<1x16x1xf32> to vector<16x1xf32>
    %43 = arith.mulf %40, %42 : vector<16x1xf32>
    %44 = vector.broadcast %43 : vector<16x1xf32> to vector<16x16xf32>
    %45 = arith.mulf %26, %44 : vector<16x16xf32>
    %cst_24 = arith.constant dense<0.000000e+00> : vector<16xf32>
    %46 = vector.multi_reduction <add>, %45, %cst_24 [0] : vector<16x16xf32> to vector<16xf32>
    %47 = vector.shape_cast %46 : vector<16xf32> to vector<1x16xf32>
    %cst_25 = arith.constant dense<0.000000e+00> : vector<32x16xf32>
    %48 = tpu.matmul %1, %45, %cst_25 {dimension_numbers = #tpu.dot_dimension_numbers<[0], [0], [1], [1], [0, 1, 1, 1], [], []>} : vector<16x32xf32>, vector<16x16xf32>, vector<32x16xf32> -> vector<32x16xf32>
    %cst_26 = arith.constant 0.000000e+00 : f32
    %49 = vector.broadcast %cst_26 : f32 to vector<1x16xf32>
    %50 = arith.cmpf ogt, %47, %49 : vector<1x16xf32>
    %51 = tpu.reciprocal %47 {approx = true} : vector<1x16xf32> -> vector<1x16xf32>
    %cst_27 = arith.constant 0.000000e+00 : f32
    %52 = vector.broadcast %cst_27 : f32 to vector<1x16xf32>
    %53 = arith.select %50, %51, %52 : vector<1x16xi1>, vector<1x16xf32>
    %54 = vector.broadcast %53 : vector<1x16xf32> to vector<32x16xf32>
    %55 = arith.mulf %48, %54 : vector<32x16xf32>
    %cst_28 = arith.constant dense<0.000000e+00> : vector<16x32xf32>
    %56 = tpu.matmul %31, %55, %cst_28 {dimension_numbers = #tpu.dot_dimension_numbers<[1], [1], [0], [0], [0, 0, 1, 0], [], []>} : vector<16x16xf32>, vector<32x16xf32>, vector<16x32xf32> -> vector<16x32xf32>
    %c0_29 = arith.constant 0 : index
    %c0_30 = arith.constant 0 : index
    %c0_31 = arith.constant 0 : index
    %57 = vector.load %arg7[%c0_29, %c0_30, %c0_31] : memref<1x16x32xf32, #tpu.memory_space<vmem>>, vector<1x16x32xf32>
    %58 = vector.shape_cast %57 : vector<1x16x32xf32> to vector<16x32xf32>
    %59 = vector.shape_cast %56 : vector<16x32xf32> to vector<1x16x32xf32>
    tpu.vector_store %arg7[%c0_29, %c0_30, %c0_31], %59 {strides = array<i32>} : memref<1x16x32xf32, #tpu.memory_space<vmem>>, vector<1x16x32xf32>,
    return
  }
  func.func @transform_0(%arg0: i32) -> (i32, i32, i32) {
    %c0_i32 = arith.constant 0 : i32
    %c0_i32_0 = arith.constant 0 : i32
    %c0_i32_1 = arith.constant 0 : i32
    return %arg0, %c0_i32, %c0_i32_0 : i32, i32, i32
  }
  func.func @transform_1(%arg0: i32) -> (i32, i32, i32) {
    %c0_i32 = arith.constant 0 : i32
    %c0_i32_0 = arith.constant 0 : i32
    %c0_i32_1 = arith.constant 0 : i32
    return %arg0, %c0_i32, %c0_i32_0 : i32, i32, i32
  }
  func.func @transform_2(%arg0: i32) -> (i32, i32, i32) {
    %c0_i32 = arith.constant 0 : i32
    %c0_i32_0 = arith.constant 0 : i32
    %c0_i32_1 = arith.constant 0 : i32
    return %arg0, %c0_i32, %c0_i32_0 : i32, i32, i32
  }
  func.func @transform_3(%arg0: i32) -> (i32, i32, i32) {
    %c0_i32 = arith.constant 0 : i32
    %c0_i32_0 = arith.constant 0 : i32
    %c0_i32_1 = arith.constant 0 : i32
    return %arg0, %c0_i32, %c0_i32_0 : i32, i32, i32
  }
  func.func @transform_4(%arg0: i32) -> (i32, i32) {
    %c0_i32 = arith.constant 0 : i32
    %c0_i32_0 = arith.constant 0 : i32
    %c0_i32_1 = arith.constant 0 : i32
    return %c0_i32, %c0_i32_0 : i32, i32
  }
  func.func @transform_5(%arg0: i32) -> (i32, i32, i32) {
    %c0_i32 = arith.constant 0 : i32
    %c0_i32_0 = arith.constant 0 : i32
    %c0_i32_1 = arith.constant 0 : i32
    return %arg0, %c0_i32, %c0_i32_0 : i32, i32, i32
  }
  func.func @transform_6(%arg0: i32) -> (i32, i32, i32) {
    %c0_i32 = arith.constant 0 : i32
    %c0_i32_0 = arith.constant 0 : i32
    %c0_i32_1 = arith.constant 0 : i32
    return %arg0, %c0_i32, %c0_i32_0 : i32, i32, i32
  }
}

</mosaic_0001>

<llo_original>
// kernel: tpu_custom_call.1
$region0: #{tpu_custom_call.1}
  #allocation0 [shape = 'u32[]', space=smem, size = 0x4, offset = 0x4, fixed_abs, tag = 'smem constant byte address 0x4 - core index']
  #allocation1 [shape = 'u32[144,128]{1,0:T(1,128)}', space=vmem, size = 0x12000, scoped, tag = 'internal scratch']
  %s0 = inlined_call_operand.vmem [shape: f32[2,16,32], index: 0, kind: input, shape index: {}]
  %s1 = inlined_call_operand.hbm [shape: f32[2,16,32], index: 1, kind: input, shape index: {}]
  %s2 = inlined_call_operand.vmem [shape: f32[2,16,1], index: 2, kind: input, shape index: {}]
  %s3 = inlined_call_operand.vmem [shape: f32[2,1,16], index: 3, kind: input, shape index: {}]
  %s4 = inlined_call_operand.vmem [shape: f32[3,32], index: 4, kind: input, shape index: {}]
  %s5 = inlined_call_operand.hbm [shape: f32[2,16,32], index: 5, kind: output, shape index: {0}]
  %s6 = inlined_call_operand.hbm [shape: f32[2,16,32], index: 6, kind: output, shape index: {1}]
  %7 = xla_tuple %s5, %s6
  %s8 = sld [smem:[#allocation0]]
  $region65: #{tpu_custom_call.1} parent=0
    _
  %s10 = ssub.s32 1, %s8
  %s11 = scalar_select 0, %s10, %s8
  $region1: #{tpu_custom_call.1} parent=0
    #allocation2 [shape = 'u8[16384]{0}', space=vmem, size = 0x4000, scoped, tag = 'input window, operand 1']
    #allocation3 [shape = 's32[2]{0}', space=sflag, size = 0x8, scoped, tag = 'scoped memory for tpu_custom_call.1']
    #allocation4 [shape = 's32[2]{0}', space=sflag, size = 0x8, scoped, tag = 'scoped memory for tpu_custom_call.1']
    #allocation5 [shape = 'u8[16384]{0}', space=vmem, size = 0x4000, scoped, tag = 'output window, operand 0']
    #allocation6 [shape = 'u8[16384]{0}', space=vmem, size = 0x4000, scoped, tag = 'output window, operand 1']
    #allocation7 [shape = 's32[2]{0}', space=sflag, size = 0x8, scoped, tag = 'scoped memory for tpu_custom_call.1']
    %12 = vsyncpa [#allocation3], 0
    %s13 = scalar_lea.sflag [#allocation3], 1
    %14 = vsyncpa %s13, 0
    %15 = vsyncpa [#allocation4], 0
    %s16 = scalar_lea.sflag [#allocation4], 1
    %17 = vsyncpa %s16, 0
    %18 = vsyncpa [#allocation7], 0
    %s19 = scalar_lea.sflag [#allocation7], 1
    %20 = vsyncpa %s19, 0
    loop: start=0, step=1, limit=4
    $region2: #{tpu_custom_call.1} parent=1 // loop_pre_header
      _
    $region3: #{tpu_custom_call.1} parent=1 // loop_header
      %s22 = sphi 0, %s26
      %p23 = scmp.ge.s32.totalorder %s22, 4
      %s32 = sphi 0, %s34
      %s35 = sphi 0, %s32
      %s36 = sphi 0, %s35
      %s52 = sphi 0, %s36
      %s58 = sphi 0, %s60
      %s61 = sphi 0, %s58
      %s62 = sphi 0, %s61
      %s78 = sphi 0, %s62
      %s84 = sphi 0, %s86
      %s87 = sphi 0, %s84
      %s88 = sphi 0, %s87
      %s104 = sphi 0, %s88
      %s110 = sphi 0, %s112
      %s113 = sphi 0, %s110
      %s114 = sphi 0, %s113
      %s130 = sphi 0, %s114
      %s134 = sphi 0, %s134
      %s136 = sphi 0, %s134
      %s137 = sphi 0, %s136
      %s151 = sphi 0, %s137
      %s157 = sphi 0, %s159
      %s160 = sphi 0, %s157
      %s161 = sphi 0, %s160
      %s177 = sphi 0, %s161
      %s183 = sphi 0, %s185
      %s186 = sphi 0, %s183
      %s187 = sphi 0, %s186
      %s203 = sphi 0, %s187
    $region4: #{tpu_custom_call.1} parent=1 // loop_header_branch
      %25 = sbr.rel (%p23) target = $region8
    $region5: #{tpu_custom_call.1} parent=1 // loop_body
      %s27 = ssub.s32 %s22, 1
      %s28 = ssub.s32 %s22, 2
      %s29 = sadd.s32 %s22, 1
      %s30 = ssub.s32 %s22, %s29
      %p31 = scmp.eq.s32.totalorder %s30, 0
      %s33 = sadd.s32 %s32, 1
      %s34 = scalar_select %p31, %s32, %s33
      %p37 = pneg %p31
      %p38 = scmp.eq.s32.totalorder %s22, 1
      %p39 = por %p37, %p38
      %p40 = scmp.ne.s32.totalorder %s32, %s35
      %p41 = scmp.eq.s32.totalorder %s22, 0
      %p42 = por %p40, %p41
      %p43 = scmp.ne.s32.totalorder %s32, %s35
      %p44 = scmp.eq.s32.totalorder %s27, 1
      %p45 = por %p43, %p44
      %p46 = scmp.ne.s32.totalorder %s35, %s36
      %p47 = scmp.eq.s32.totalorder %s27, 0
      %p48 = por %p46, %p47
      %p49 = scmp.ne.s32.totalorder %s35, %s36
      %p50 = scmp.eq.s32.totalorder %s28, 1
      %p51 = por %p49, %p50
      %p53 = scmp.ne.s32.totalorder %s36, %s52
      %p54 = scmp.eq.s32.totalorder %s28, 0
      %p55 = por %p53, %p54
      %s56 = ssub.s32 %s22, %s29
      %p57 = scmp.eq.s32.totalorder %s56, 0
      %s59 = sadd.s32 %s58, 1
      %s60 = scalar_select %p57, %s58, %s59
      %p63 = pneg %p57
      %p64 = scmp.eq.s32.totalorder %s22, 1
      %p65 = por %p63, %p64
      %p66 = scmp.ne.s32.totalorder %s58, %s61
      %p67 = scmp.eq.s32.totalorder %s22, 0
      %p68 = por %p66, %p67
      %p69 = scmp.ne.s32.totalorder %s58, %s61
      %p70 = scmp.eq.s32.totalorder %s27, 1
      %p71 = por %p69, %p70
      %p72 = scmp.ne.s32.totalorder %s61, %s62
      %p73 = scmp.eq.s32.totalorder %s27, 0
      %p74 = por %p72, %p73
      %p75 = scmp.ne.s32.totalorder %s61, %s62
      %p76 = scmp.eq.s32.totalorder %s28, 1
      %p77 = por %p75, %p76
      %p79 = scmp.ne.s32.totalorder %s62, %s78
      %p80 = scmp.eq.s32.totalorder %s28, 0
      %p81 = por %p79, %p80
      %s82 = ssub.s32 %s22, %s29
      %p83 = scmp.eq.s32.totalorder %s82, 0
      %s85 = sadd.s32 %s84, 1
      %s86 = scalar_select %p83, %s84, %s85
      %p89 = pneg %p83
      %p90 = scmp.eq.s32.totalorder %s22, 1
      %p91 = por %p89, %p90
      %p92 = scmp.ne.s32.totalorder %s84, %s87
      %p93 = scmp.eq.s32.totalorder %s22, 0
      %p94 = por %p92, %p93
      %p95 = scmp.ne.s32.totalorder %s84, %s87
      %p96 = scmp.eq.s32.totalorder %s27, 1
      %p97 = por %p95, %p96
      %p98 = scmp.ne.s32.totalorder %s87, %s88
      %p99 = scmp.eq.s32.totalorder %s27, 0
      %p100 = por %p98, %p99
      %p101 = scmp.ne.s32.totalorder %s87, %s88
      %p102 = scmp.eq.s32.totalorder %s28, 1
      %p103 = por %p101, %p102
      %p105 = scmp.ne.s32.totalorder %s88, %s104
      %p106 = scmp.eq.s32.totalorder %s28, 0
      %p107 = por %p105, %p106
      %s108 = ssub.s32 %s22, %s29
      %p109 = scmp.eq.s32.totalorder %s108, 0
      %s111 = sadd.s32 %s110, 1
      %s112 = scalar_select %p109, %s110, %s111
      %p115 = pneg %p109
      %p116 = scmp.eq.s32.totalorder %s22, 1
      %p117 = por %p115, %p116
      %p118 = scmp.ne.s32.totalorder %s110, %s113
      %p119 = scmp.eq.s32.totalorder %s22, 0
      %p120 = por %p118, %p119
      %p121 = scmp.ne.s32.totalorder %s110, %s113
      %p122 = scmp.eq.s32.totalorder %s27, 1
      %p123 = por %p121, %p122
      %p124 = scmp.ne.s32.totalorder %s113, %s114
      %p125 = scmp.eq.s32.totalorder %s27, 0
      %p126 = por %p124, %p125
      %p127 = scmp.ne.s32.totalorder %s113, %s114
      %p128 = scmp.eq.s32.totalorder %s28, 1
      %p129 = por %p127, %p128
      %p131 = scmp.ne.s32.totalorder %s114, %s130
      %p132 = scmp.eq.s32.totalorder %s28, 0
      %p133 = por %p131, %p132
      %s135 = sadd.s32 %s134, 1
      %p138 = scmp.eq.s32.totalorder %s22, 1
      %p139 = scmp.ne.s32.totalorder %s134, %s136
      %p140 = scmp.eq.s32.totalorder %s22, 0
      %p141 = por %p139, %p140
      %p142 = scmp.ne.s32.totalorder %s134, %s136
      %p143 = scmp.eq.s32.totalorder %s27, 1
      %p144 = por %p142, %p143
      %p145 = scmp.ne.s32.totalorder %s136, %s137
      %p146 = scmp.eq.s32.totalorder %s27, 0
      %p147 = por %p145, %p146
      %p148 = scmp.ne.s32.totalorder %s136, %s137
      %p149 = scmp.eq.s32.totalorder %s28, 1
      %p150 = por %p148, %p149
      %p152 = scmp.ne.s32.totalorder %s137, %s151
      %p153 = scmp.eq.s32.totalorder %s28, 0
      %p154 = por %p152, %p153
      %s155 = ssub.s32 %s22, %s29
      %p156 = scmp.eq.s32.totalorder %s155, 0
      %s158 = sadd.s32 %s157, 1
      %s159 = scalar_select %p156, %s157, %s158
      %p162 = pneg %p156
      %p163 = scmp.eq.s32.totalorder %s22, 1
      %p164 = por %p162, %p163
      %p165 = scmp.ne.s32.totalorder %s157, %s160
      %p166 = scmp.eq.s32.totalorder %s22, 0
      %p167 = por %p165, %p166
      %p168 = scmp.ne.s32.totalorder %s157, %s160
      %p169 = scmp.eq.s32.totalorder %s27, 1
      %p170 = por %p168, %p169
      %p171 = scmp.ne.s32.totalorder %s160, %s161
      %p172 = scmp.eq.s32.totalorder %s27, 0
      %p173 = por %p171, %p172
      %p174 = scmp.ne.s32.totalorder %s160, %s161
      %p175 = scmp.eq.s32.totalorder %s28, 1
      %p176 = por %p174, %p175
      %p178 = scmp.ne.s32.totalorder %s161, %s177
      %p179 = scmp.eq.s32.totalorder %s28, 0
      %p180 = por %p178, %p179
      %s181 = ssub.s32 %s22, %s29
      %p182 = scmp.eq.s32.totalorder %s181, 0
      %s184 = sadd.s32 %s183, 1
      %s185 = scalar_select %p182, %s183, %s184
      %p188 = pneg %p182
      %p189 = scmp.eq.s32.totalorder %s22, 1
      %p190 = por %p188, %p189
      %p191 = scmp.ne.s32.totalorder %s183, %s186
      %p192 = scmp.eq.s32.totalorder %s22, 0
      %p193 = por %p191, %p192
      %p194 = scmp.ne.s32.totalorder %s183, %s186
      %p195 = scmp.eq.s32.totalorder %s27, 1
      %p196 = por %p194, %p195
      %p197 = scmp.ne.s32.totalorder %s186, %s187
      %p198 = scmp.eq.s32.totalorder %s27, 0
      %p199 = por %p197, %p198
      %p200 = scmp.ne.s32.totalorder %s186, %s187
      %p201 = scmp.eq.s32.totalorder %s28, 1
      %p202 = por %p200, %p201
      %p204 = scmp.ne.s32.totalorder %s187, %s203
      %p205 = scmp.eq.s32.totalorder %s28, 0
      %p206 = por %p204, %p205
      %p207 = scmp.le.s32.totalorder 1, %s22
      %p208 = scmp.lt.s32.totalorder %s22, 3
      %p209 = pnand %p207, %p208
      %p210 = pneg %p209
      // Predicated region
      $region9: #{tpu_custom_call.1} parent=5 // pred_check
        _
      $region10: #{tpu_custom_call.1} parent=5 // pred_check_branch
        %212 = sbr.rel (%p209) target = $region12
      $region11: #{tpu_custom_call.1} parent=5 // pred_region
        %s213 = ssub.s32 %s22, 1
        // Predicated region
        $region13: #{tpu_custom_call.1} parent=11 // pred_check
          %p214 = pneg %p147
        $region14: #{tpu_custom_call.1} parent=11 // pred_check_branch
          %216 = sbr.rel (%p214) target = $region16
        $region15: #{tpu_custom_call.1} parent=11 // pred_region
          _
        $region16: #{tpu_custom_call.1} parent=11 // pred_fallthru
          _
      $region12: #{tpu_custom_call.1} parent=5 // pred_fallthru
        _
      %p217 = scmp.lt.s32.totalorder %s22, 2
      // Predicated region
      $region17: #{tpu_custom_call.1} parent=5 // pred_check
        %p218 = pneg %p217
      $region18: #{tpu_custom_call.1} parent=5 // pred_check_branch
        %220 = sbr.rel (%p218) target = $region20
      $region19: #{tpu_custom_call.1} parent=5 // pred_region
        // Predicated region
        $region21: #{tpu_custom_call.1} parent=19 // pred_check
          %p221 = pneg %p42
        $region22: #{tpu_custom_call.1} parent=19 // pred_check_branch
          %223 = sbr.rel (%p221) target = $region24
        $region23: #{tpu_custom_call.1} parent=19 // pred_region
          %p224 = scmp.lt.s32.totalorder %s22, 1
          %s225 = scalar_select %p224, %s22, 1
          %s226 = smul.addr %s225, 2
          %s227 = smul.addr %s226, 8
          %s228 = scalar_lea.vmem %s0, %s227
        $region24: #{tpu_custom_call.1} parent=19 // pred_fallthru
          _
        // Predicated region
        $region25: #{tpu_custom_call.1} parent=19 // pred_check
          %p229 = pneg %p68
        $region26: #{tpu_custom_call.1} parent=19 // pred_check_branch
          %231 = sbr.rel (%p229) target = $region28
        $region27: #{tpu_custom_call.1} parent=19 // pred_region
          %s232 = sand.u32 %s58, 1
          %s233 = scalar_lea.sflag [#allocation3], %s232
          %s234 = sand.u32 %s58, 1
          %s235 = smul.addr %s234, 16
          %s236 = scalar_lea.vmem [#allocation2], %s235
          %s238 = ssub.s32 256, 256
          %239 = vsyncadd %s233, %s238
          %s240 = smul.addr %s22, 2
          %s241 = smul.addr %s240, 128
          %s242 = scalar_lea.hbm %s1, %s241
          %s243 = sshll.u32 %s236, 4
          %s244 = int_to_ptr.vmem [resolvable:$true] %s243
          %249 = dma.hbm_to_vmem [thread:$0]  %s242, 256, %s244, %s233, 128, 128, 8
        $region28: #{tpu_custom_call.1} parent=19 // pred_fallthru
          _
        // Predicated region
        $region29: #{tpu_custom_call.1} parent=19 // pred_check
          %p250 = pneg %p94
        $region30: #{tpu_custom_call.1} parent=19 // pred_check_branch
          %252 = sbr.rel (%p250) target = $region32
        $region31: #{tpu_custom_call.1} parent=19 // pred_region
          %p253 = scmp.lt.s32.totalorder %s22, 1
          %s254 = scalar_select %p253, %s22, 1
          %s255 = smul.addr %s254, 2
          %s256 = smul.addr %s255, 8
          %s257 = scalar_lea.vmem %s2, %s256
        $region32: #{tpu_custom_call.1} parent=19 // pred_fallthru
          _
        // Predicated region
        $region33: #{tpu_custom_call.1} parent=19 // pred_check
          %p258 = pneg %p120
        $region34: #{tpu_custom_call.1} parent=19 // pred_check_branch
          %260 = sbr.rel (%p258) target = $region36
        $region35: #{tpu_custom_call.1} parent=19 // pred_region
          %p261 = scmp.lt.s32.totalorder %s22, 1
          %s262 = scalar_select %p261, %s22, 1
          %s263 = scalar_lea.vmem %s3, %s262
        $region36: #{tpu_custom_call.1} parent=19 // pred_fallthru
          _
      $region20: #{tpu_custom_call.1} parent=5 // pred_fallthru
        _
      %p264 = scmp.le.s32.totalorder 1, %s22
      %p265 = scmp.lt.s32.totalorder %s22, 3
      %p266 = pnand %p264, %p265
      %p267 = pneg %p266
      // Predicated region
      $region37: #{tpu_custom_call.1} parent=5 // pred_check
        _
      $region38: #{tpu_custom_call.1} parent=5 // pred_check_branch
        %269 = sbr.rel (%p266) target = $region40
      $region39: #{tpu_custom_call.1} parent=5 // pred_region
        %s270 = ssub.s32 %s22, 1
        %s271 = sand.u32 %s61, 1
        %s272 = scalar_lea.sflag [#allocation3], %s271
        %s273 = sand.u32 %s61, 1
        %s274 = smul.addr %s273, 16
        %s275 = scalar_lea.vmem [#allocation2], %s274
        // Predicated region
        $region41: #{tpu_custom_call.1} parent=39 // pred_check
          %p276 = pneg %p74
        $region42: #{tpu_custom_call.1} parent=39 // pred_check_branch
          %278 = sbr.rel (%p276) target = $region44
        $region43: #{tpu_custom_call.1} parent=39 // pred_region
          %279 = dma.done %s272, 256
        $region44: #{tpu_custom_call.1} parent=39 // pred_fallthru
          _
        %p280 = scmp.lt.s32.totalorder %s27, 1
        %s281 = scalar_select %p280, %s27, 1
        %s282 = smul.addr %s281, 2
        %s283 = smul.addr %s282, 8
        %s284 = scalar_lea.vmem %s0, %s283
        %p285 = pneg %p48
        %p286 = pneg %p45
        %s287 = sand.u32 %s61, 1
        %s288 = scalar_lea.sflag [#allocation3], %s287
        %s289 = sand.u32 %s61, 1
        %s290 = smul.addr %s289, 16
        %s291 = scalar_lea.vmem [#allocation2], %s290
        %p292 = pneg %p74
        %p293 = pneg %p71
        %p294 = scmp.lt.s32.totalorder %s27, 1
        %s295 = scalar_select %p294, %s27, 1
        %s296 = smul.addr %s295, 2
        %s297 = smul.addr %s296, 8
        %s298 = scalar_lea.vmem %s2, %s297
        %p299 = pneg %p100
        %p300 = pneg %p97
        %p301 = scmp.lt.s32.totalorder %s27, 1
        %s302 = scalar_select %p301, %s27, 1
        %s303 = scalar_lea.vmem %s3, %s302
        %p304 = pneg %p126
        %p305 = pneg %p123
        %p306 = pneg %p147
        %p307 = pneg %p144
        %p308 = pneg %p173
        %p309 = pneg %p170
        %s310 = sand.u32 %s160, 1
        %s311 = scalar_lea.sflag [#allocation4], %s310
        %s312 = sand.u32 %s160, 1
        %s313 = smul.addr %s312, 16
        %s314 = scalar_lea.vmem [#allocation5], %s313
        %p315 = pneg %p199
        %p316 = pneg %p196
        %s317 = sand.u32 %s186, 1
        %s318 = scalar_lea.sflag [#allocation7], %s317
        %s319 = sand.u32 %s186, 1
        %s320 = smul.addr %s319, 16
        %s321 = scalar_lea.vmem [#allocation6], %s320
        %p322 = scmp.lt.s32.totalorder %s27, 1
        %s323 = scalar_select %p322, %s27, 1
        %s324 = smul.addr %s323, 2
        %s325 = smul.addr %s324, 8
        %s326 = scalar_lea.vmem %s0, %s325
        %p327 = scmp.lt.s32.totalorder %s27, 1
        %s328 = scalar_select %p327, %s27, 1
        %s329 = smul.addr %s328, 2
        %s330 = smul.addr %s329, 8
        %s331 = scalar_lea.vmem %s2, %s330
        %p332 = scmp.lt.s32.totalorder %s27, 1
        %s333 = scalar_select %p332, %s27, 1
        %s334 = scalar_lea.vmem %s3, %s333
        %v335 = vld [vmem:[%s326] sm:$0xff]
        %v336 = vld [vmem:[%s326 + $0x8] sm:$0xff]
        %v337 = vld [vmem:[%s275] sm:$0xff]
        %v338 = vld [vmem:[%s275 + $0x8] sm:$0xff]
        %v339 = vld [vmem:[%s4] sm:$0x1]
        %v340 = vld [vmem:[%s4 + $0x1] sm:$0x1]
        %v341 = vld [vmem:[%s4 + $0x2] sm:$0x1]
        %vm342 = vcmask 261120
        %v344 = vsel %vm342, %v340, 0
        %v347 = vsel %vm342, %v337, 0
        %v350 = vsel %vm342, %v338, 0
        %352 = vmatprep.subr.mxu0 0.0
        %353 = vmatpush1.xpose.msra.mxu0 %v347
        %354 = vmatprep.subr.mxu0 0.0
        %355 = vmatpush1.xpose.msra.mxu0 %v350
        %356 = vmatprep.subr.mxu0 0.0
        %357 = vmatpush1.xpose.msra.mxu0 0.0
        %358 = vmatprep.subr.mxu0 0.0
        %359 = vmatpush1.xpose.msra.mxu0 0.0
        %360 = vmatprep.subr.mxu0 0.0
        %361 = vmatpush1.xpose.msra.mxu0 0.0
        %362 = vmatprep.subr.mxu0 0.0
        %363 = vmatpush1.xpose.msra.mxu0 0.0
        %364 = vmatprep.subr.mxu0 0.0
        %365 = vmatpush1.xpose.msra.mxu0 0.0
        %366 = vmatprep.subr.mxu0 0.0
        %367 = vmatpush1.xpose.msra.mxu0 0.0
        %368 = vmatprep.subr.mxu0 0.0
        %369 = vmatpush1.xpose.msra.mxu0 0.0
        %370 = vmatprep.subr.mxu0 0.0
        %371 = vmatpush1.xpose.msra.mxu0 0.0
        %372 = vmatprep.subr.mxu0 0.0
        %373 = vmatpush1.xpose.msra.mxu0 0.0
        %374 = vmatprep.subr.mxu0 0.0
        %375 = vmatpush1.xpose.msra.mxu0 0.0
        %376 = vmatprep.subr.mxu0 0.0
        %377 = vmatpush1.xpose.msra.mxu0 0.0
        %378 = vmatprep.subr.mxu0 0.0
        %379 = vmatpush1.xpose.msra.mxu0 0.0
        %380 = vmatprep.subr.mxu0 0.0
        %381 = vmatpush1.xpose.msra.mxu0 0.0
        %382 = vmatprep.subr.mxu0 0.0
        %383 = vmatpush1.xpose.msra.mxu0 0.0
        %384 = vmatprep.subr.mxu0 0.0
        %385 = vmatpush1.xpose.msra.mxu0 0.0
        %386 = vmatprep.subr.mxu0 0.0
        %387 = vmatpush1.xpose.msra.mxu0 0.0
        %388 = vmatprep.subr.mxu0 0.0
        %389 = vmatpush1.xpose.msra.mxu0 0.0
        %390 = vmatprep.subr.mxu0 0.0
        %391 = vmatpush1.xpose.msra.mxu0 0.0
        %392 = vmatprep.subr.mxu0 0.0
        %393 = vmatpush1.xpose.msra.mxu0 0.0
        %394 = vmatprep.subr.mxu0 0.0
        %395 = vmatpush1.xpose.msra.mxu0 0.0
        %396 = vmatprep.subr.mxu0 0.0
        %397 = vmatpush1.xpose.msra.mxu0 0.0
        %398 = vmatprep.subr.mxu0 0.0
        %399 = vmatpush1.xpose.msra.mxu0 0.0
        %400 = vmatprep.subr.mxu0 0.0
        %401 = vmatpush1.xpose.msra.mxu0 0.0
        %402 = vmatprep.subr.mxu0 0.0
        %403 = vmatpush1.xpose.msra.mxu0 0.0
        %404 = vmatprep.subr.mxu0 0.0
        %405 = vmatpush1.xpose.msra.mxu0 0.0
        %406 = vmatprep.subr.mxu0 0.0
        %407 = vmatpush1.xpose.msra.mxu0 0.0
        %408 = vmatprep.subr.mxu0 0.0
        %409 = vmatpush1.xpose.msra.mxu0 0.0
        %410 = vmatprep.subr.mxu0 0.0
        %411 = vmatpush1.xpose.msra.mxu0 0.0
        %412 = vmatprep.subr.mxu0 0.0
        %413 = vmatpush1.xpose.msra.mxu0 0.0
        %414 = vmatprep.subr.mxu0 0.0
        %415 = vmatpush1.xpose.msra.mxu0 0.0
        %416 = vmatprep.mubr.f32.mxu0 0.0
        %417 = vmatmul.mubr.f32.gmra.mrb[0].mxu0 %v344
        %v418 = vpop.f32.mrb[0].mxu0
        %v419 = vadd.f32 0.0, %v418
        %v420 = vpop.f32.mrb[0].mxu0
        %421 = vdwg.mxu0
        %v422 = vld [vmem:[%s334] sm:$0x1]
        %v423 = vadd.f32 %v422, %v419
        %v424 = vlaneseq
        %v425 = vshrl.u32 %v424, 7
        %v426 = vsub.s32 0, %v425
        %v427 = vrot.slane %v339, %v426
        %v428 = vmul.f32 %v335, %v427
        %v429 = vmul.f32 %v336, %v427
        %v430 = vsel %vm342, %v428, 0.0
        %431 = vadd.xlane.f32.xlu0 %v430
        %v432 = vpop.xlane.xlu0 %431
        %v433 = vsel %vm342, %v429, 0.0
        %434 = vadd.xlane.f32.xlu0 %v433
        %v435 = vpop.xlane.xlu0 %434
        %v436 = vlaneseq
        %v437 = vshrl.u32 %v436, 7
        %v438 = vsub.s32 0, %v437
        %v439 = vrot.slane %v341, %v438
        %v440 = vmul.f32 %v335, %v439
        %v441 = vmul.f32 %v336, %v439
        %v443 = vsel %vm342, %v440, 0
        %v446 = vsel %vm342, %v441, 0
        %448 = vmatprep.subr.mxu0 0.0
        %449 = vmatpush1.xpose.msra.mxu0 %v347
        %450 = vmatprep.subr.mxu0 0.0
        %451 = vmatpush1.xpose.msra.mxu0 %v350
        %452 = vmatprep.subr.mxu0 0.0
        %453 = vmatpush1.xpose.msra.mxu0 0.0
        %454 = vmatprep.subr.mxu0 0.0
        %455 = vmatpush1.xpose.msra.mxu0 0.0
        %456 = vmatprep.subr.mxu0 0.0
        %457 = vmatpush1.xpose.msra.mxu0 0.0
        %458 = vmatprep.subr.mxu0 0.0
        %459 = vmatpush1.xpose.msra.mxu0 0.0
        %460 = vmatprep.subr.mxu0 0.0
        %461 = vmatpush1.xpose.msra.mxu0 0.0
        %462 = vmatprep.subr.mxu0 0.0
        %463 = vmatpush1.xpose.msra.mxu0 0.0
        %464 = vmatprep.subr.mxu0 0.0
        %465 = vmatpush1.xpose.msra.mxu0 0.0
        %466 = vmatprep.subr.mxu0 0.0
        %467 = vmatpush1.xpose.msra.mxu0 0.0
        %468 = vmatprep.subr.mxu0 0.0
        %469 = vmatpush1.xpose.msra.mxu0 0.0
        %470 = vmatprep.subr.mxu0 0.0
        %471 = vmatpush1.xpose.msra.mxu0 0.0
        %472 = vmatprep.subr.mxu0 0.0
        %473 = vmatpush1.xpose.msra.mxu0 0.0
        %474 = vmatprep.subr.mxu0 0.0
        %475 = vmatpush1.xpose.msra.mxu0 0.0
        %476 = vmatprep.subr.mxu0 0.0
        %477 = vmatpush1.xpose.msra.mxu0 0.0
        %478 = vmatprep.subr.mxu0 0.0
        %479 = vmatpush1.xpose.msra.mxu0 0.0
        %480 = vmatprep.subr.mxu0 0.0
        %481 = vmatpush1.xpose.msra.mxu0 0.0
        %482 = vmatprep.subr.mxu0 0.0
        %483 = vmatpush1.xpose.msra.mxu0 0.0
        %484 = vmatprep.subr.mxu0 0.0
        %485 = vmatpush1.xpose.msra.mxu0 0.0
        %486 = vmatprep.subr.mxu0 0.0
        %487 = vmatpush1.xpose.msra.mxu0 0.0
        %488 = vmatprep.subr.mxu0 0.0
        %489 = vmatpush1.xpose.msra.mxu0 0.0
        %490 = vmatprep.subr.mxu0 0.0
        %491 = vmatpush1.xpose.msra.mxu0 0.0
        %492 = vmatprep.subr.mxu0 0.0
        %493 = vmatpush1.xpose.msra.mxu0 0.0
        %494 = vmatprep.subr.mxu0 0.0
        %495 = vmatpush1.xpose.msra.mxu0 0.0
        %496 = vmatprep.subr.mxu0 0.0
        %497 = vmatpush1.xpose.msra.mxu0 0.0
        %498 = vmatprep.subr.mxu0 0.0
        %499 = vmatpush1.xpose.msra.mxu0 0.0
        %500 = vmatprep.subr.mxu0 0.0
        %501 = vmatpush1.xpose.msra.mxu0 0.0
        %502 = vmatprep.subr.mxu0 0.0
        %503 = vmatpush1.xpose.msra.mxu0 0.0
        %504 = vmatprep.subr.mxu0 0.0
        %505 = vmatpush1.xpose.msra.mxu0 0.0
        %506 = vmatprep.subr.mxu0 0.0
        %507 = vmatpush1.xpose.msra.mxu0 0.0
        %508 = vmatprep.subr.mxu0 0.0
        %509 = vmatpush1.xpose.msra.mxu0 0.0
        %510 = vmatprep.subr.mxu0 0.0
        %511 = vmatpush1.xpose.msra.mxu0 0.0
        %512 = vmatprep.mubr.f32.mxu0 0.0
        %513 = vmatmul.mubr.f32.gmra.mrb[0].mxu0 %v443
        %v514 = vpop.f32.mrb[0].mxu0
        %v515 = vadd.f32 %v432, %v514
        %v516 = vpop.f32.mrb[0].mxu0
        %517 = vmatprep.mubr.f32.mxu0 0.0
        %518 = vmatmul.mubr.f32.gmra.mrb[0].mxu0 %v446
        %v519 = vpop.f32.mrb[0].mxu0
        %v520 = vadd.f32 %v435, %v519
        %v521 = vpop.f32.mrb[0].mxu0
        %522 = vdwg.mxu0
        %v524 = vlaneseq
        %v525 = vshrl.u32 %v524, 7
        %v526 = vsub.s32 0, %v525
        %v527 = vrot.slane %v423, %v526
        %v529 = vadd.f32 %v515, %v527
        %v530 = vadd.f32 %v520, %v527
        %vm531 = vcmask 130048
        %v532 = vsel %vm531, %v529, -inf
        %533 = vmax.xlane.f32.xlu0 %v532
        %v534 = vpop.xlane.xlu0 %533
        %v535 = vsel %vm531, %v530, -inf
        %536 = vmax.xlane.f32.xlu0 %v535
        %v537 = vpop.xlane.xlu0 %536
        %v538 = vsub.f32 %v529, %v534
        %v539 = vsub.f32 %v530, %v537
        %v540 = vmul.f32 %v538, 1.442695
        %v541 = vpow.pop %v540
        %v542 = vmul.f32 %v539, 1.442695
        %v543 = vpow.pop %v542
        %v544 = vsel %vm531, %v541, 0.0
        %545 = vadd.xlane.f32.xlu0 %v544
        %v546 = vpop.xlane.xlu0 %545
        %v547 = vsel %vm531, %v543, 0.0
        %548 = vadd.xlane.f32.xlu0 %v547
        %v549 = vpop.xlane.xlu0 %548
        %v550 = vrcp.pop %v546
        %v551 = vrcp.pop %v549
        %v552 = vmul.f32 %v541, %v550
        %v553 = vmul.f32 %v543, %v551
        %v555 = vsel %vm531, %v552, 0
        %v558 = vsel %vm531, %v553, 0
        %560 = vmatprep.subr.mxu0 0.0
        %561 = vmatpush1.msra.mxu0 %v337
        %562 = vmatprep.subr.mxu0 0.0
        %563 = vmatpush1.msra.mxu0 %v338
        %564 = vmatprep.subr.mxu0 0.0
        %565 = vmatpush1.msra.mxu0 0.0
        %566 = vmatprep.subr.mxu0 0.0
        %567 = vmatpush1.msra.mxu0 0.0
        %568 = vmatprep.subr.mxu0 0.0
        %569 = vmatpush1.msra.mxu0 0.0
        %570 = vmatprep.subr.mxu0 0.0
        %571 = vmatpush1.msra.mxu0 0.0
        %572 = vmatprep.subr.mxu0 0.0
        %573 = vmatpush1.msra.mxu0 0.0
        %574 = vmatprep.subr.mxu0 0.0
        %575 = vmatpush1.msra.mxu0 0.0
        %576 = vmatprep.subr.mxu0 0.0
        %577 = vmatpush1.msra.mxu0 0.0
        %578 = vmatprep.subr.mxu0 0.0
        %579 = vmatpush1.msra.mxu0 0.0
        %580 = vmatprep.subr.mxu0 0.0
        %581 = vmatpush1.msra.mxu0 0.0
        %582 = vmatprep.subr.mxu0 0.0
        %583 = vmatpush1.msra.mxu0 0.0
        %584 = vmatprep.subr.mxu0 0.0
        %585 = vmatpush1.msra.mxu0 0.0
        %586 = vmatprep.subr.mxu0 0.0
        %587 = vmatpush1.msra.mxu0 0.0
        %588 = vmatprep.subr.mxu0 0.0
        %589 = vmatpush1.msra.mxu0 0.0
        %590 = vmatprep.subr.mxu0 0.0
        %591 = vmatpush1.msra.mxu0 0.0
        %592 = vmatprep.subr.mxu0 0.0
        %593 = vmatpush1.msra.mxu0 0.0
        %594 = vmatprep.subr.mxu0 0.0
        %595 = vmatpush1.msra.mxu0 0.0
        %596 = vmatprep.subr.mxu0 0.0
        %597 = vmatpush1.msra.mxu0 0.0
        %598 = vmatprep.subr.mxu0 0.0
        %599 = vmatpush1.msra.mxu0 0.0
        %600 = vmatprep.subr.mxu0 0.0
        %601 = vmatpush1.msra.mxu0 0.0
        %602 = vmatprep.subr.mxu0 0.0
        %603 = vmatpush1.msra.mxu0 0.0
        %604 = vmatprep.subr.mxu0 0.0
        %605 = vmatpush1.msra.mxu0 0.0
        %606 = vmatprep.subr.mxu0 0.0
        %607 = vmatpush1.msra.mxu0 0.0
        %608 = vmatprep.subr.mxu0 0.0
        %609 = vmatpush1.msra.mxu0 0.0
        %610 = vmatprep.subr.mxu0 0.0
        %611 = vmatpush1.msra.mxu0 0.0
        %612 = vmatprep.subr.mxu0 0.0
        %613 = vmatpush1.msra.mxu0 0.0
        %614 = vmatprep.subr.mxu0 0.0
        %615 = vmatpush1.msra.mxu0 0.0
        %616 = vmatprep.subr.mxu0 0.0
        %617 = vmatpush1.msra.mxu0 0.0
        %618 = vmatprep.subr.mxu0 0.0
        %619 = vmatpush1.msra.mxu0 0.0
        %620 = vmatprep.subr.mxu0 0.0
        %621 = vmatpush1.msra.mxu0 0.0
        %622 = vmatprep.subr.mxu0 0.0
        %623 = vmatpush1.msra.mxu0 0.0
        %624 = vmatprep.mubr.f32.mxu0 0.0
        %625 = vmatmul.mubr.f32.gmra.mrb[0].mxu0 %v555
        %v626 = vpop.f32.mrb[0].mxu0
        %v627 = vadd.f32 0.0, %v626
        %v628 = vpop.f32.mrb[0].mxu0
        %629 = vmatprep.mubr.f32.mxu0 0.0
        %630 = vmatmul.mubr.f32.gmra.mrb[0].mxu0 %v558
        %v631 = vpop.f32.mrb[0].mxu0
        %v632 = vadd.f32 0.0, %v631
        %v633 = vpop.f32.mrb[0].mxu0
        %634 = vdwg.mxu0
        %635 = vst.msk [vmem:[%s314] sm:$0xff] %vm342, %v627
        %636 = vst.msk [vmem:[%s314 + $0x8] sm:$0xff] %vm342, %v632
        %v637 = vmax.f32 %v534, %v537
        %v638 = vrot.slane %v637, 4
        %v639 = vmax.f32 %v637, %v638
        %v640 = vrot.slane %v639, 2
        %v641 = vmax.f32 %v639, %v640
        %v642 = vrot.slane %v641, 1
        %v643 = vmax.f32 %v641, %v642
        %v644 = vsub.f32 %v534, %v643
        %v645 = vsub.f32 %v537, %v643
        %v646 = vmul.f32 %v644, 1.442695
        %v647 = vpow.pop %v646
        %v648 = vmul.f32 %v645, 1.442695
        %v649 = vpow.pop %v648
        %v650 = vld [vmem:[%s331] sm:$0xff]
        %v651 = vld [vmem:[%s331 + $0x8] sm:$0xff]
        %v652 = vmul.f32 %v647, %v650
        %v653 = vmul.f32 %v649, %v651
        %655 = vset.pattern.permute.xlu0 0
        %656 = vperm.xlu0 %655, %v652
        %v657 = vpop.permute.xlu0 %656
        %660 = vset.pattern.permute.xlu0 0
        %661 = vperm.xlu0 %660, %v653
        %v662 = vpop.permute.xlu0 %661
        %v664 = vmul.f32 %v541, %v657
        %v665 = vmul.f32 %v543, %v662
        %v666 = vsel %vm531, %v664, 0.0
        %v667 = vsel %vm531, %v665, 0.0
        %v668 = vadd.f32 %v666, %v667
        %v669 = vrot.slane %v668, 4
        %v670 = vadd.f32 %v668, %v669
        %v671 = vrot.slane %v670, 2
        %v672 = vadd.f32 %v670, %v671
        %v673 = vrot.slane %v672, 1
        %v674 = vadd.f32 %v672, %v673
        %675 = vxpose.xlu0.b32.start [1/16] %v335, 128
        %676 = vxpose.xlu0.b32.cont [2/16] %v336, 128
        %677 = vxpose.xlu0.b32.cont [3/16] 0.0, 128
        %678 = vxpose.xlu0.b32.cont [4/16] 0.0, 128
        %679 = vxpose.xlu0.b32.cont [5/16] 0.0, 128
        %680 = vxpose.xlu0.b32.cont [6/16] 0.0, 128
        %681 = vxpose.xlu0.b32.cont [7/16] 0.0, 128
        %682 = vxpose.xlu0.b32.cont [8/16] 0.0, 128
        %683 = vxpose.xlu0.b32.cont [9/16] 0.0, 128
        %684 = vxpose.xlu0.b32.cont [10/16] 0.0, 128
        %685 = vxpose.xlu0.b32.cont [11/16] 0.0, 128
        %686 = vxpose.xlu0.b32.cont [12/16] 0.0, 128
        %687 = vxpose.xlu0.b32.cont [13/16] 0.0, 128
        %688 = vxpose.xlu0.b32.cont [14/16] 0.0, 128
        %689 = vxpose.xlu0.b32.cont [15/16] 0.0, 128
        %690 = vxpose.xlu0.b32.end [16/16] 0.0, 128
        %v691 = vpop.trf.xlu0
        %v692 = vpop.trf.xlu0
        %v693 = vpop.trf.xlu0
        %v694 = vpop.trf.xlu0
        %v695 = vpop.trf.xlu0
        %v696 = vpop.trf.xlu0
        %v697 = vpop.trf.xlu0
        %v698 = vpop.trf.xlu0
        %v699 = vpop.trf.xlu0
        %v700 = vpop.trf.xlu0
        %v701 = vpop.trf.xlu0
        %v702 = vpop.trf.xlu0
        %v703 = vpop.trf.xlu0
        %v704 = vpop.trf.xlu0
        %v705 = vpop.trf.xlu0
        %v706 = vpop.trf.xlu0
        %v708 = vsel %vm531, %v691, 0
        %v711 = vsel %vm531, %v692, 0
        %v714 = vsel %vm531, %v693, 0
        %v717 = vsel %vm531, %v694, 0
        %719 = vmatprep.subr.mxu0 0.0
        %720 = vmatpush1.msra.mxu0 %v664
        %721 = vmatprep.subr.mxu0 0.0
        %722 = vmatpush1.msra.mxu0 %v665
        %723 = vmatprep.subr.mxu0 0.0
        %724 = vmatpush1.msra.mxu0 0.0
        %725 = vmatprep.subr.mxu0 0.0
        %726 = vmatpush1.msra.mxu0 0.0
        %727 = vmatprep.subr.mxu0 0.0
        %728 = vmatpush1.msra.mxu0 0.0
        %729 = vmatprep.subr.mxu0 0.0
        %730 = vmatpush1.msra.mxu0 0.0
        %731 = vmatprep.subr.mxu0 0.0
        %732 = vmatpush1.msra.mxu0 0.0
        %733 = vmatprep.subr.mxu0 0.0
        %734 = vmatpush1.msra.mxu0 0.0
        %735 = vmatprep.subr.mxu0 0.0
        %736 = vmatpush1.msra.mxu0 0.0
        %737 = vmatprep.subr.mxu0 0.0
        %738 = vmatpush1.msra.mxu0 0.0
        %739 = vmatprep.subr.mxu0 0.0
        %740 = vmatpush1.msra.mxu0 0.0
        %741 = vmatprep.subr.mxu0 0.0
        %742 = vmatpush1.msra.mxu0 0.0
        %743 = vmatprep.subr.mxu0 0.0
        %744 = vmatpush1.msra.mxu0 0.0
        %745 = vmatprep.subr.mxu0 0.0
        %746 = vmatpush1.msra.mxu0 0.0
        %747 = vmatprep.subr.mxu0 0.0
        %748 = vmatpush1.msra.mxu0 0.0
        %749 = vmatprep.subr.mxu0 0.0
        %750 = vmatpush1.msra.mxu0 0.0
        %751 = vmatprep.subr.mxu0 0.0
        %752 = vmatpush1.msra.mxu0 0.0
        %753 = vmatprep.subr.mxu0 0.0
        %754 = vmatpush1.msra.mxu0 0.0
        %755 = vmatprep.subr.mxu0 0.0
        %756 = vmatpush1.msra.mxu0 0.0
        %757 = vmatprep.subr.mxu0 0.0
        %758 = vmatpush1.msra.mxu0 0.0
        %759 = vmatprep.subr.mxu0 0.0
        %760 = vmatpush1.msra.mxu0 0.0
        %761 = vmatprep.subr.mxu0 0.0
        %762 = vmatpush1.msra.mxu0 0.0
        %763 = vmatprep.subr.mxu0 0.0
        %764 = vmatpush1.msra.mxu0 0.0
        %765 = vmatprep.subr.mxu0 0.0
        %766 = vmatpush1.msra.mxu0 0.0
        %767 = vmatprep.subr.mxu0 0.0
        %768 = vmatpush1.msra.mxu0 0.0
        %769 = vmatprep.subr.mxu0 0.0
        %770 = vmatpush1.msra.mxu0 0.0
        %771 = vmatprep.subr.mxu0 0.0
        %772 = vmatpush1.msra.mxu0 0.0
        %773 = vmatprep.subr.mxu0 0.0
        %774 = vmatpush1.msra.mxu0 0.0
        %775 = vmatprep.subr.mxu0 0.0
        %776 = vmatpush1.msra.mxu0 0.0
        %777 = vmatprep.subr.mxu0 0.0
        %778 = vmatpush1.msra.mxu0 0.0
        %779 = vmatprep.subr.mxu0 0.0
        %780 = vmatpush1.msra.mxu0 0.0
        %781 = vmatprep.subr.mxu0 0.0
        %782 = vmatpush1.msra.mxu0 0.0
        %783 = vmatprep.mubr.f32.mxu0 0.0
        %784 = vmatmul.mubr.f32.gmra.mrb[0].mxu0 %v708
        %v785 = vpop.f32.mrb[0].mxu0
        %v786 = vadd.f32 0.0, %v785
        %v787 = vpop.f32.mrb[0].mxu0
        %788 = vmatprep.mubr.f32.mxu0 0.0
        %789 = vmatmul.mubr.f32.gmra.mrb[0].mxu0 %v711
        %v790 = vpop.f32.mrb[0].mxu0
        %v791 = vadd.f32 0.0, %v790
        %v792 = vpop.f32.mrb[0].mxu0
        %793 = vmatprep.mubr.f32.mxu0 0.0
        %794 = vmatmul.mubr.f32.gmra.mrb[0].mxu0 %v714
        %v795 = vpop.f32.mrb[0].mxu0
        %v796 = vadd.f32 0.0, %v795
        %v797 = vpop.f32.mrb[0].mxu0
        %798 = vmatprep.mubr.f32.mxu0 0.0
        %799 = vmatmul.mubr.f32.gmra.mrb[0].mxu0 %v717
        %v800 = vpop.f32.mrb[0].mxu0
        %v801 = vadd.f32 0.0, %v800
        %v802 = vpop.f32.mrb[0].mxu0
        %803 = vdwg.mxu0
        %vm804 = vcmp.gt.f32.partialorder %v674, 0.0
        %v805 = vrcp.pop %v674
        %v806 = vsel %vm804, %v805, 0.0
        %v807 = vmul.f32 %v786, %v806
        %v808 = vmul.f32 %v791, %v806
        %v809 = vmul.f32 %v796, %v806
        %v810 = vmul.f32 %v801, %v806
        %v812 = vsel %vm531, %v807, 0
        %v815 = vsel %vm531, %v808, 0
        %v818 = vsel %vm531, %v809, 0
        %v821 = vsel %vm531, %v810, 0
        %823 = vmatprep.subr.mxu0 0.0
        %824 = vmatpush1.xpose.msra.mxu0 %v812
        %825 = vmatprep.subr.mxu0 0.0
        %826 = vmatpush1.xpose.msra.mxu0 %v815
        %827 = vmatprep.subr.mxu0 0.0
        %828 = vmatpush1.xpose.msra.mxu0 %v818
        %829 = vmatprep.subr.mxu0 0.0
        %830 = vmatpush1.xpose.msra.mxu0 %v821
        %831 = vmatprep.subr.mxu0 0.0
        %832 = vmatpush1.xpose.msra.mxu0 0.0
        %833 = vmatprep.subr.mxu0 0.0
        %834 = vmatpush1.xpose.msra.mxu0 0.0
        %835 = vmatprep.subr.mxu0 0.0
        %836 = vmatpush1.xpose.msra.mxu0 0.0
        %837 = vmatprep.subr.mxu0 0.0
        %838 = vmatpush1.xpose.msra.mxu0 0.0
        %839 = vmatprep.subr.mxu0 0.0
        %840 = vmatpush1.xpose.msra.mxu0 0.0
        %841 = vmatprep.subr.mxu0 0.0
        %842 = vmatpush1.xpose.msra.mxu0 0.0
        %843 = vmatprep.subr.mxu0 0.0
        %844 = vmatpush1.xpose.msra.mxu0 0.0
        %845 = vmatprep.subr.mxu0 0.0
        %846 = vmatpush1.xpose.msra.mxu0 0.0
        %847 = vmatprep.subr.mxu0 0.0
        %848 = vmatpush1.xpose.msra.mxu0 0.0
        %849 = vmatprep.subr.mxu0 0.0
        %850 = vmatpush1.xpose.msra.mxu0 0.0
        %851 = vmatprep.subr.mxu0 0.0
        %852 = vmatpush1.xpose.msra.mxu0 0.0
        %853 = vmatprep.subr.mxu0 0.0
        %854 = vmatpush1.xpose.msra.mxu0 0.0
        %855 = vmatprep.subr.mxu0 0.0
        %856 = vmatpush1.xpose.msra.mxu0 0.0
        %857 = vmatprep.subr.mxu0 0.0
        %858 = vmatpush1.xpose.msra.mxu0 0.0
        %859 = vmatprep.subr.mxu0 0.0
        %860 = vmatpush1.xpose.msra.mxu0 0.0
        %861 = vmatprep.subr.mxu0 0.0
        %862 = vmatpush1.xpose.msra.mxu0 0.0
        %863 = vmatprep.subr.mxu0 0.0
        %864 = vmatpush1.xpose.msra.mxu0 0.0
        %865 = vmatprep.subr.mxu0 0.0
        %866 = vmatpush1.xpose.msra.mxu0 0.0
        %867 = vmatprep.subr.mxu0 0.0
        %868 = vmatpush1.xpose.msra.mxu0 0.0
        %869 = vmatprep.subr.mxu0 0.0
        %870 = vmatpush1.xpose.msra.mxu0 0.0
        %871 = vmatprep.subr.mxu0 0.0
        %872 = vmatpush1.xpose.msra.mxu0 0.0
        %873 = vmatprep.subr.mxu0 0.0
        %874 = vmatpush1.xpose.msra.mxu0 0.0
        %875 = vmatprep.subr.mxu0 0.0
        %876 = vmatpush1.xpose.msra.mxu0 0.0
        %877 = vmatprep.subr.mxu0 0.0
        %878 = vmatpush1.xpose.msra.mxu0 0.0
        %879 = vmatprep.subr.mxu0 0.0
        %880 = vmatpush1.xpose.msra.mxu0 0.0
        %881 = vmatprep.subr.mxu0 0.0
        %882 = vmatpush1.xpose.msra.mxu0 0.0
        %883 = vmatprep.subr.mxu0 0.0
        %884 = vmatpush1.xpose.msra.mxu0 0.0
        %885 = vmatprep.subr.mxu0 0.0
        %886 = vmatpush1.xpose.msra.mxu0 0.0
        %887 = vmatprep.mubr.f32.mxu0 0.0
        %888 = vmatmul.mubr.f32.gmra.mrb[0].mxu0 %v555
        %v889 = vpop.f32.mrb[0].mxu0
        %v890 = vadd.f32 0.0, %v889
        %v891 = vpop.f32.mrb[0].mxu0
        %892 = vmatprep.mubr.f32.mxu0 0.0
        %893 = vmatmul.mubr.f32.gmra.mrb[0].mxu0 %v558
        %v894 = vpop.f32.mrb[0].mxu0
        %v895 = vadd.f32 0.0, %v894
        %v896 = vpop.f32.mrb[0].mxu0
        %897 = vdwg.mxu0
        %898 = vst.msk [vmem:[%s321] sm:$0xff] %vm342, %v890
        %899 = vst.msk [vmem:[%s321 + $0x8] sm:$0xff] %vm342, %v895
        %s900 = sand.u32 %s160, 1
        %s901 = scalar_lea.sflag [#allocation4], %s900
        %s902 = sand.u32 %s160, 1
        %s903 = smul.addr %s902, 16
        %s904 = scalar_lea.vmem [#allocation5], %s903
        %s905 = sand.u32 %s186, 1
        %s906 = scalar_lea.sflag [#allocation7], %s905
        %s907 = sand.u32 %s186, 1
        %s908 = smul.addr %s907, 16
        %s909 = scalar_lea.vmem [#allocation6], %s908
        // Predicated region
        $region45: #{tpu_custom_call.1} parent=39 // pred_check
          %p910 = pneg %p170
        $region46: #{tpu_custom_call.1} parent=39 // pred_check_branch
          %912 = sbr.rel (%p910) target = $region48
        $region47: #{tpu_custom_call.1} parent=39 // pred_region
          %s914 = ssub.s32 256, 256
          %915 = vsyncadd %s901, %s914
          %s916 = smul.addr %s27, 2
          %s917 = smul.addr %s916, 128
          %s918 = scalar_lea.hbm %s5, %s917
          %s919 = sshll.u32 %s904, 4
          %s920 = int_to_ptr.vmem [resolvable:$true] %s919
          %925 = dma.vmem_to_hbm [thread:$0]  %s920, 256, %s918, %s901, 128, 128, 8
        $region48: #{tpu_custom_call.1} parent=39 // pred_fallthru
          _
        // Predicated region
        $region49: #{tpu_custom_call.1} parent=39 // pred_check
          %p926 = pneg %p196
        $region50: #{tpu_custom_call.1} parent=39 // pred_check_branch
          %928 = sbr.rel (%p926) target = $region52
        $region51: #{tpu_custom_call.1} parent=39 // pred_region
          %s930 = ssub.s32 256, 256
          %931 = vsyncadd %s906, %s930
          %s932 = smul.addr %s27, 2
          %s933 = smul.addr %s932, 128
          %s934 = scalar_lea.hbm %s6, %s933
          %s935 = sshll.u32 %s909, 4
          %s936 = int_to_ptr.vmem [resolvable:$true] %s935
          %941 = dma.vmem_to_hbm [thread:$0]  %s936, 256, %s934, %s906, 128, 128, 8
        $region52: #{tpu_custom_call.1} parent=39 // pred_fallthru
          _
      $region40: #{tpu_custom_call.1} parent=5 // pred_fallthru
        _
      %p942 = scmp.le.s32.totalorder 2, %s22
      // Predicated region
      $region53: #{tpu_custom_call.1} parent=5 // pred_check
        %p943 = pneg %p942
      $region54: #{tpu_custom_call.1} parent=5 // pred_check_branch
        %945 = sbr.rel (%p943) target = $region56
      $region55: #{tpu_custom_call.1} parent=5 // pred_region
        %s946 = ssub.s32 %s22, 2
        // Predicated region
        $region57: #{tpu_custom_call.1} parent=55 // pred_check
          %p947 = pneg %p176
        $region58: #{tpu_custom_call.1} parent=55 // pred_check_branch
          %949 = sbr.rel (%p947) target = $region60
        $region59: #{tpu_custom_call.1} parent=55 // pred_region
          %s950 = sand.u32 %s161, 1
          %s951 = scalar_lea.sflag [#allocation4], %s950
          %s952 = sand.u32 %s161, 1
          %s953 = smul.addr %s952, 16
          %s954 = scalar_lea.vmem [#allocation5], %s953
          %955 = dma.done %s951, 256
        $region60: #{tpu_custom_call.1} parent=55 // pred_fallthru
          _
        // Predicated region
        $region61: #{tpu_custom_call.1} parent=55 // pred_check
          %p956 = pneg %p202
        $region62: #{tpu_custom_call.1} parent=55 // pred_check_branch
          %958 = sbr.rel (%p956) target = $region64
        $region63: #{tpu_custom_call.1} parent=55 // pred_region
          %s959 = sand.u32 %s187, 1
          %s960 = scalar_lea.sflag [#allocation7], %s959
          %s961 = sand.u32 %s187, 1
          %s962 = smul.addr %s961, 16
          %s963 = scalar_lea.vmem [#allocation6], %s962
          %964 = dma.done %s960, 256
        $region64: #{tpu_custom_call.1} parent=55 // pred_fallthru
          _
      $region56: #{tpu_custom_call.1} parent=5 // pred_fallthru
        _
    $region6: #{tpu_custom_call.1} parent=1 // loop_footer
      %s26 = sadd.s32 1, %s22
    $region7: #{tpu_custom_call.1} parent=1 // loop_footer_branch
      %21 = sbr.rel target = $region3
    $region8: #{tpu_custom_call.1} parent=1 // loop_exit
      _
    %965 = vsyncpa [#allocation3], 1
    %s966 = scalar_lea.sflag [#allocation3], 1
    %967 = vsyncpa %s966, 1
    %968 = vsyncpa [#allocation4], 1
    %s969 = scalar_lea.sflag [#allocation4], 1
    %970 = vsyncpa %s969, 1
    %971 = vsyncpa [#allocation7], 1
    %s972 = scalar_lea.sflag [#allocation7], 1
    %973 = vsyncpa %s972, 1

</llo_original>
